<compile_context>
chip_gen: v7x
topology: tpu7x:2x2x1
jax: 0.10.0
libtpu: 0.0.40
codegen_flags: <defaults>
</compile_context>

<pallas_src>
import functools
from typing import NamedTuple, Optional

import jax
import jax.numpy as jnp
from jax import lax
from jax.experimental import pallas as pl
from jax.experimental.pallas import tpu as pltpu


def _round_up(v, m):
    return ((v + m - 1) // m) * m


# ---------------------------------------------------------------------------
# Per-generation tile caps (roofline: flops/byte needed to be MXU-bound).
#   v5e : 197 TF/s bf16 vs ~0.82 TB/s -> ~240 flops/byte   (512 x 1024 is plenty)
#   v6e : 918 TF/s bf16 vs ~1.4  TB/s -> ~650 flops/byte   (1024 x 2048, raise VMEM)
#   v7x : 996 TF/s/TC  vs ~3.2  TB/s -> ~310 flops/byte    (512 x 1024; only 64 MiB VMEM)
# ---------------------------------------------------------------------------
_TILE_TABLE = {
    # chip : (tm_cap, tn_cap, tk_cap, vmem_limit_bytes)
    "v5e": (512, 1024, 512, 48 << 20),
    "v6e": (1024, 2048, 512, 64 << 20),
    "v7x": (512, 1024, 512, 48 << 20),
}


def _chip_name():
    kind = ""
    try:
        kind = jax.devices()[0].device_kind.lower()
    except Exception:
        pass
    if "v7" in kind:
        return "v7x"
    if "v6" in kind:
        return "v6e"
    if "v5e" in kind or "v5 lite" in kind or "v5lite" in kind:
        return "v5e"
    # v4 / v5p / unknown: 128 MiB VMEM parts -> v6e-sized tiles are safe.
    return "v6e"


def _select_tiles(M, N, K, compute_dtype):
    chip = _chip_name()
    tm_cap, tn_cap, tk_cap, vmem_limit = _TILE_TABLE[chip]
    itemsize = jnp.dtype(compute_dtype).itemsize
    sub = 16 if itemsize <= 2 else 8           # bf16 packs 2 rows per sublane
    tk = min(tk_cap, _round_up(K, 128))
    Np = _round_up(N, 128)
    tn = min(tn_cap, Np)
    tm = tm_cap if M >= tm_cap else _round_up(M, sub)
    # v7x has 2 TensorCores: keep >=2 blocks on a parallel axis when possible so
    # dimension_semantics=("parallel","parallel",...) can actually shard the grid.
    if chip == "v7x" and pl.cdiv(M, tm) == 1 and pl.cdiv(Np, tn) == 1 and Np >= 256:
        tn = _round_up(pl.cdiv(Np, 2), 128)
    return tm, tn, tk, vmem_limit


# ---------------------------------------------------------------------------
# One-time parameter preparation (hoist off the per-call hot path).
# ---------------------------------------------------------------------------
class FCParams(NamedTuple):
    w_kn: jax.Array      # (Kp, Np), compute dtype, pre-transposed + zero-padded
    bias2d: jax.Array    # (1, Np), float32 (zeros if bias=None)
    in_features: int     # K (unpadded)
    out_features: int    # N (unpadded)


def prepare_fc_params(weight, bias=None, *, compute_dtype=jnp.bfloat16,
                      tk: Optional[int] = None) -> FCParams:
    """Cast / transpose / pad nn.Linear parameters ONCE (at load time).

    weight: (out_channels, in_channels)  -- PyTorch nn.Linear layout
    bias:   (out_channels,) or None
    """
    N, K = weight.shape
    if compute_dtype is None:
        compute_dtype = weight.dtype
    if tk is None:
        _, _, tk, _ = _select_tiles(1, N, K, compute_dtype)  # tk is M-independent
    Kp = _round_up(K, tk)
    Np = _round_up(N, 128)
    w_kn = weight.astype(compute_dtype).T                    # (K, N): standard contraction
    if (Kp, Np) != (K, N):
        w_kn = jnp.pad(w_kn, ((0, Kp - K), (0, Np - N)))     # zero pad -> tail contributes 0
    if bias is None:
        b2d = jnp.zeros((1, Np), jnp.float32)
    else:
        b2d = bias.astype(jnp.float32).reshape(1, N)
        if Np != N:
            b2d = jnp.pad(b2d, ((0, 0), (0, Np - N)))
    return FCParams(w_kn, b2d, K, N)


# ---------------------------------------------------------------------------
# Kernel: one (tm, tn) output tile; k (reduction) is the innermost grid axis.
# ---------------------------------------------------------------------------
def _fc_block_kernel(x_ref, w_ref, b_ref, o_ref, acc_ref, *,
                     negative_slope, k_valid, tk):
    k = pl.program_id(2)

    @pl.when(k == 0)
    def _():
        # Fold the bias into the accumulator init (no epilogue add).
        acc_ref[...] = jnp.broadcast_to(b_ref[...], acc_ref.shape)

    x = x_ref[...]
    if k_valid % tk:
        # K is not a tk multiple: zero the out-of-bounds K tail of the x tile so
        # unspecified HBM data (possibly NaN) never reaches the accumulator.
        # The weight is zero-padded along K at prepare time, so the tail is 0.
        col = lax.broadcasted_iota(jnp.int32, x.shape, 1)
        x = jnp.where(k * tk + col < k_valid, x, jnp.zeros_like(x))

    # MXU: (tm, tk) @ (tk, tn) -> (tm, tn), f32 accumulate. Weight tile is already
    # in (in, out) layout, so this is the standard contraction (no per-tile transpose).
    acc_ref[...] += jnp.dot(x, w_ref[...], preferred_element_type=jnp.float32)

    @pl.when(k == pl.num_programs(2) - 1)
    def _():
        acc = acc_ref[...]
        out = jnp.where(acc >= 0, acc, negative_slope * acc)   # LeakyReLU(0.2)
        o_ref[...] = out.astype(o_ref.dtype)


# ---------------------------------------------------------------------------
# Hot-path wrapper (pre-prepared params).
# ---------------------------------------------------------------------------
def fully_connect_block_prepared(x, params: FCParams, *, negative_slope=0.2,
                                 tm=None, tn=None, tk=None):
    """y = LeakyReLU(x @ W.T + b, negative_slope) with pre-prepared params."""
    K, N = params.in_features, params.out_features
    Kp, Np = params.w_kn.shape
    assert x.shape[-1] == K, "x last dim must equal in_channels"

    orig_shape = x.shape
    out_dtype = x.dtype
    compute_dtype = params.w_kn.dtype
    x2d = x.reshape(-1, K).astype(compute_dtype)   # normalize operand dtypes
    M = x2d.shape[0]

    tm_s, tn_s, tk_s, vmem_limit = _select_tiles(M, N, K, compute_dtype)
    tm = tm or tm_s
    tn = tn or min(tn_s, Np)
    tk = tk or min(tk_s, Kp)
    assert Kp % tk == 0, "params were prepared for a different tk; re-run prepare_fc_params"

    grid_m, grid_n, grid_k = pl.cdiv(M, tm), pl.cdiv(Np, tn), Kp // tk
    grid = (grid_m, grid_n, grid_k)

    item = jnp.dtype(compute_dtype).itemsize
    cost = pl.CostEstimate(
        flops=2 * M * Kp * Np,
        transcendentals=0,
        bytes_accessed=(grid_n * x2d.size * item                 # x re-streamed per N block
                        + grid_m * params.w_kn.size * item       # W re-streamed per M block
                        + params.bias2d.size * 4
                        + M * Np * jnp.dtype(out_dtype).itemsize))

    kernel = functools.partial(_fc_block_kernel, negative_slope=negative_slope,
                               k_valid=K, tk=tk)

    out2d = pl.pallas_call(
        kernel,
        out_shape=jax.ShapeDtypeStruct((M, Np), out_dtype),
        grid_spec=pltpu.PrefetchScalarGridSpec(
            num_scalar_prefetch=0,
            grid=grid,
            in_specs=[
                pl.BlockSpec((tm, tk), lambda i, j, k: (i, k)),   # x tile
                pl.BlockSpec((tk, tn), lambda i, j, k: (k, j)),   # W (in,out) tile
                pl.BlockSpec((1, tn), lambda i, j, k: (0, j)),    # bias tile
                # NOTE: consider pipeline_mode=pl.Buffered(3) on the weight spec if a
                # trace shows exposed DMA at tk=512 -- verify before committing.
            ],
            out_specs=pl.BlockSpec((tm, tn), lambda i, j, k: (i, j)),
            scratch_shapes=[pltpu.VMEM((tm, tn), jnp.float32)],
        ),
        compiler_params=pltpu.CompilerParams(
            dimension_semantics=("parallel", "parallel", "arbitrary"),
            vmem_limit_bytes=vmem_limit),
        cost_estimate=cost,
    )(x2d, params.w_kn, params.bias2d)

    if Np != N:
        out2d = out2d[:, :N]   # no-op when out_channels is a 128 multiple
    return out2d.reshape(*orig_shape[:-1], N)


def fully_connect_block(x, weight, bias=None, negative_slope=0.2, *,
                        compute_dtype=jnp.bfloat16):
    """Convenience wrapper matching FullyConnectBlock.forward.

    Prepares (cast / transpose / pad) the weight per call; for repeated use,
    call prepare_fc_params once and fully_connect_block_prepared in the loop.
    """
    params = prepare_fc_params(weight, bias, compute_dtype=compute_dtype)
    return fully_connect_block_prepared(x, params, negative_slope=negative_slope)


def _reference(x, weight, bias, negative_slope=0.2):
    y = jnp.einsum("...k,nk->...n", x, weight)
    if bias is not None:
        y = y + bias
    return jnp.where(y >= 0, y, negative_slope * y)


if __name__ == "__main__":
    key = jax.random.PRNGKey(0)
    k_x, k_w, k_b = jax.random.split(key, 3)

    batch, in_channels, out_channels = 16, 32, 64
    x = jax.random.normal(k_x, (batch, in_channels), dtype=jnp.float32)
    # Deterministic "nn.Linear"-like init (uniform in +-1/sqrt(in)).
    bound = 1.0 / (in_channels ** 0.5)
    weight = jax.random.uniform(k_w, (out_channels, in_channels),
                                minval=-bound, maxval=bound, dtype=jnp.float32)
    bias = jax.random.uniform(k_b, (out_channels,),
                              minval=-bound, maxval=bound, dtype=jnp.float32)

    y_ref = _reference(x, weight, bias, negative_slope=0.2)

    # Recommended path: prepare params once, reuse. f32 operands -> exact vs reference.
    params_f32 = prepare_fc_params(weight, bias, compute_dtype=jnp.float32)
    y = jax.block_until_ready(fully_connect_block_prepared(x, params_f32))
    assert y.shape == (batch, out_channels)
    assert jnp.allclose(y, y_ref, atol=1e-5, rtol=1e-5)

    # Default bf16 MXU-operand path (f32 accumulation) -- looser tolerance.
    params_bf16 = prepare_fc_params(weight, bias)
    y_bf16 = jax.block_until_ready(fully_connect_block_prepared(x, params_bf16))
    assert y_bf16.shape == (batch, out_channels)
    assert jnp.allclose(y_bf16, y_ref, atol=1e-1, rtol=1e-1)

    # Convenience wrapper (per-call prep) matching the module interface directly.
    y_conv = jax.block_until_ready(fully_connect_block(x, weight, bias))
    assert jnp.allclose(y_conv, y_ref, atol=1e-1, rtol=1e-1)

    print("KERNEL_OK")
</pallas_src>

<mosaic_0001>
module attributes {stable_mosaic.version = 11 : i64} {
  func.func @_fc_block_kernel(%arg0: i32, %arg1: i32, %arg2: i32, %arg3: memref<16x128xf32, #tpu.memory_space<vmem>>, %arg4: memref<128x128xf32, #tpu.memory_space<vmem>>, %arg5: memref<1x128xf32, #tpu.memory_space<vmem>>, %arg6: memref<16x128xf32, #tpu.memory_space<vmem>>, %arg7: memref<16x128xf32, #tpu.memory_space<vmem>>) attributes {dimension_semantics = [#tpu.dimension_semantics<parallel>, #tpu.dimension_semantics<parallel>, #tpu.dimension_semantics<arbitrary>], iteration_bounds = array<i64: 1, 1, 1>, scalar_prefetch = 0 : i64, scratch_operands = 1 : i64, tpu.core_type = #tpu.core_type<tc>, window_params = [{transform_indices = @transform_0, window_bounds = array<i64: 16, 128>}, {transform_indices = @transform_1, window_bounds = array<i64: 128, 128>}, {transform_indices = @transform_2, window_bounds = array<i64: 1, 128>}, {transform_indices = @transform_3, window_bounds = array<i64: 16, 128>}]} {
    %c0_i32 = arith.constant 0 : i32
    %0 = arith.cmpi eq, %arg2, %c0_i32 : i32
    %1 = arith.extui %0 : i1 to i32
    %c0_i32_0 = arith.constant 0 : i32
    %2 = arith.cmpi ne, %1, %c0_i32_0 : i32
    scf.if %2 {
      %c0_11 = arith.constant 0 : index
      %c0_12 = arith.constant 0 : index
      %20 = vector.load %arg5[%c0_11, %c0_12] : memref<1x128xf32, #tpu.memory_space<vmem>>, vector<1x128xf32>
      %21 = vector.shape_cast %20 : vector<1x128xf32> to vector<1x128xf32>
      %22 = vector.broadcast %21 : vector<1x128xf32> to vector<16x128xf32>
      %c0_13 = arith.constant 0 : index
      %c0_14 = arith.constant 0 : index
      %23 = vector.load %arg7[%c0_13, %c0_14] : memref<16x128xf32, #tpu.memory_space<vmem>>, vector<16x128xf32>
      tpu.vector_store %arg7[%c0_13, %c0_14], %22 {strides = array<i32>} : memref<16x128xf32, #tpu.memory_space<vmem>>, vector<16x128xf32>,
    } else {
    }
    %c0 = arith.constant 0 : index
    %c0_1 = arith.constant 0 : index
    %3 = vector.load %arg3[%c0, %c0_1] : memref<16x128xf32, #tpu.memory_space<vmem>>, vector<16x128xf32>
    %4 = tpu.iota {dimensions = array<i32: 1>} : vector<16x128xi32>
    %c128_i32 = arith.constant 128 : i32
    %5 = arith.muli %arg2, %c128_i32 : i32
    %6 = vector.broadcast %5 : i32 to vector<16x128xi32>
    %7 = arith.addi %6, %4 : vector<16x128xi32>
    %c32_i32 = arith.constant 32 : i32
    %8 = vector.broadcast %c32_i32 : i32 to vector<16x128xi32>
    %9 = arith.cmpi slt, %7, %8 : vector<16x128xi32>
    %cst = arith.constant 0.000000e+00 : f32
    %10 = vector.broadcast %cst : f32 to vector<16x128xf32>
    %11 = arith.select %9, %3, %10 : vector<16x128xi1>, vector<16x128xf32>
    %c0_2 = arith.constant 0 : index
    %c0_3 = arith.constant 0 : index
    %12 = vector.load %arg7[%c0_2, %c0_3] : memref<16x128xf32, #tpu.memory_space<vmem>>, vector<16x128xf32>
    %c0_4 = arith.constant 0 : index
    %c0_5 = arith.constant 0 : index
    %13 = vector.load %arg4[%c0_4, %c0_5] : memref<128x128xf32, #tpu.memory_space<vmem>>, vector<128x128xf32>
    %cst_6 = arith.constant dense<0.000000e+00> : vector<16x128xf32>
    %14 = tpu.matmul %11, %13, %cst_6 {dimension_numbers = #tpu.dot_dimension_numbers<[1], [0], [0], [1], [0, 0, 1, 1], [], []>} : vector<16x128xf32>, vector<128x128xf32>, vector<16x128xf32> -> vector<16x128xf32>
    %15 = arith.addf %12, %14 : vector<16x128xf32>
    %c0_7 = arith.constant 0 : index
    %c0_8 = arith.constant 0 : index
    %16 = vector.load %arg7[%c0_7, %c0_8] : memref<16x128xf32, #tpu.memory_space<vmem>>, vector<16x128xf32>
    tpu.vector_store %arg7[%c0_7, %c0_8], %15 {strides = array<i32>} : memref<16x128xf32, #tpu.memory_space<vmem>>, vector<16x128xf32>,
    %c0_i32_9 = arith.constant 0 : i32
    %17 = arith.cmpi eq, %arg2, %c0_i32_9 : i32
    %18 = arith.extui %17 : i1 to i32
    %c0_i32_10 = arith.constant 0 : i32
    %19 = arith.cmpi ne, %18, %c0_i32_10 : i32
    scf.if %19 {
      %c0_11 = arith.constant 0 : index
      %c0_12 = arith.constant 0 : index
      %20 = vector.load %arg7[%c0_11, %c0_12] : memref<16x128xf32, #tpu.memory_space<vmem>>, vector<16x128xf32>
      %cst_13 = arith.constant 0.000000e+00 : f32
      %21 = vector.broadcast %cst_13 : f32 to vector<16x128xf32>
      %22 = arith.cmpf oge, %20, %21 : vector<16x128xf32>
      %cst_14 = arith.constant 2.000000e-01 : f32
      %23 = vector.broadcast %cst_14 : f32 to vector<16x128xf32>
      %24 = arith.mulf %23, %20 : vector<16x128xf32>
      %25 = arith.select %22, %20, %24 : vector<16x128xi1>, vector<16x128xf32>
      %c0_15 = arith.constant 0 : index
      %c0_16 = arith.constant 0 : index
      %26 = vector.load %arg6[%c0_15, %c0_16] : memref<16x128xf32, #tpu.memory_space<vmem>>, vector<16x128xf32>
      tpu.vector_store %arg6[%c0_15, %c0_16], %25 {strides = array<i32>} : memref<16x128xf32, #tpu.memory_space<vmem>>, vector<16x128xf32>,
    } else {
    }
    return
  }
  func.func @transform_0(%arg0: i32, %arg1: i32, %arg2: i32) -> (i32, i32) {
    %c0_i32 = arith.constant 0 : i32
    return %arg0, %arg2 : i32, i32
  }
  func.func @transform_1(%arg0: i32, %arg1: i32, %arg2: i32) -> (i32, i32) {
    %c0_i32 = arith.constant 0 : i32
    return %arg2, %arg1 : i32, i32
  }
  func.func @transform_2(%arg0: i32, %arg1: i32, %arg2: i32) -> (i32, i32) {
    %c0_i32 = arith.constant 0 : i32
    %c0_i32_0 = arith.constant 0 : i32
    return %c0_i32, %arg1 : i32, i32
  }
  func.func @transform_3(%arg0: i32, %arg1: i32, %arg2: i32) -> (i32, i32) {
    %c0_i32 = arith.constant 0 : i32
    return %arg0, %arg1 : i32, i32
  }
}

</mosaic_0001>

<llo_original>
// kernel: tpu_custom_call.1
$region0: #{tpu_custom_call.1}
  #allocation0 [shape = 'u32[]', space=smem, size = 0x4, offset = 0x4, fixed_abs, tag = 'smem constant byte address 0x4 - core index']
  #allocation1 [shape = 'u32[144,128]{1,0:T(1,128)}', space=vmem, size = 0x12000, scoped, tag = 'internal scratch']
  #allocation2 [shape = 'f32[16,128]{1,0:T(8,128)}', space=vmem, size = 0x2000, scoped, tag = 'scratch operand']
  %s0 = inlined_call_operand.hbm [shape: f32[16,32], index: 0, kind: input, shape index: {}]
  %s1 = inlined_call_operand.hbm [shape: f32[128,128], index: 1, kind: input, shape index: {}]
  %s2 = inlined_call_operand.hbm [shape: f32[1,128], index: 2, kind: input, shape index: {}]
  %s3 = inlined_call_operand.hbm [shape: f32[16,128], index: 3, kind: output, shape index: {}]
  %s4 = sld [smem:[#allocation0]]
  $region42: #{tpu_custom_call.1} parent=0
    _
  %s6 = ssub.s32 1, %s4
  %s7 = scalar_select 0, %s6, %s4
  $region1: #{tpu_custom_call.1} parent=0
    #allocation3 [shape = 'u8[8192]{0}', space=vmem, size = 0x2000, scoped, tag = 'input window, operand 0, single buffered']
    #allocation4 [shape = 's32[1]{0}', space=sflag, size = 0x4, scoped, tag = 'scoped memory for tpu_custom_call.1']
    #allocation5 [shape = 's32[1]{0}', space=sflag, size = 0x4, scoped, tag = 'scoped memory for tpu_custom_call.1']
    #allocation6 [shape = 'u8[65536]{0}', space=vmem, size = 0x10000, scoped, tag = 'input window, operand 1, single buffered']
    #allocation7 [shape = 's32[1]{0}', space=sflag, size = 0x4, scoped, tag = 'scoped memory for tpu_custom_call.1']
    #allocation8 [shape = 'u8[512]{0}', space=vmem, size = 0x400, scoped, tag = 'input window, operand 2, single buffered']
    #allocation9 [shape = 'u8[8192]{0}', space=vmem, size = 0x2000, scoped, tag = 'output window, operand 0, single buffered']
    %8 = vsyncpa [#allocation4], 0
    %9 = vsyncpa [#allocation7], 0
    %10 = vsyncpa [#allocation5], 0
    // Predicated region
    $region2: #{tpu_custom_call.1} parent=1 // pred_check
      _
    $region3: #{tpu_custom_call.1} parent=1 // pred_check_branch
      %12 = sbr.rel (0) target = $region5
    $region4: #{tpu_custom_call.1} parent=1 // pred_region
      %s14 = ssub.s32 256, 256
      %15 = vsyncadd [#allocation4], %s14
      %s16 = sshll.u32 [#allocation3], 4
      %s17 = int_to_ptr.vmem [resolvable:$true] %s16
      %22 = dma.hbm_to_vmem [thread:$0]  %s0, 256, %s17, [#allocation4], 128, 128, 8
    $region5: #{tpu_custom_call.1} parent=1 // pred_fallthru
      _
    // Predicated region
    $region6: #{tpu_custom_call.1} parent=1 // pred_check
      _
    $region7: #{tpu_custom_call.1} parent=1 // pred_check_branch
      %24 = sbr.rel (0) target = $region9
    $region8: #{tpu_custom_call.1} parent=1 // pred_region
      %s26 = ssub.s32 2048, 2048
      %27 = vsyncadd [#allocation7], %s26
      %s28 = sshll.u32 [#allocation6], 4
      %s29 = int_to_ptr.vmem [resolvable:$true] %s28
      %34 = dma.hbm_to_vmem [thread:$0]  %s1, 2048, %s29, [#allocation7], 128, 128, 8
    $region9: #{tpu_custom_call.1} parent=1 // pred_fallthru
      _
    // Predicated region
    $region10: #{tpu_custom_call.1} parent=1 // pred_check
      _
    $region11: #{tpu_custom_call.1} parent=1 // pred_check_branch
      %36 = sbr.rel (0) target = $region13
    $region12: #{tpu_custom_call.1} parent=1 // pred_region
      %s38 = ssub.s32 16, 16
      %39 = vsyncadd [#allocation7], %s38
      %s41 = sshll.u32 [#allocation8], 4
      %s42 = int_to_ptr.vmem [resolvable:$true] %s41
      %44 = dma.hbm_to_vmem [thread:$0]  %s2, 16, %s42, [#allocation7]
    $region13: #{tpu_custom_call.1} parent=1 // pred_fallthru
      _
    // Predicated region
    $region14: #{tpu_custom_call.1} parent=1 // pred_check
      _
    $region15: #{tpu_custom_call.1} parent=1 // pred_check_branch
      %46 = sbr.rel (0) target = $region17
    $region16: #{tpu_custom_call.1} parent=1 // pred_region
      %47 = dma.done [#allocation4], 256
    $region17: #{tpu_custom_call.1} parent=1 // pred_fallthru
      _
    // Predicated region
    $region18: #{tpu_custom_call.1} parent=1 // pred_check
      _
    $region19: #{tpu_custom_call.1} parent=1 // pred_check_branch
      %49 = sbr.rel (0) target = $region21
    $region20: #{tpu_custom_call.1} parent=1 // pred_region
      %50 = dma.done [#allocation7], 2048
    $region21: #{tpu_custom_call.1} parent=1 // pred_fallthru
      _
    // Predicated region
    $region22: #{tpu_custom_call.1} parent=1 // pred_check
      _
    $region23: #{tpu_custom_call.1} parent=1 // pred_check_branch
      %52 = sbr.rel (0) target = $region25
    $region24: #{tpu_custom_call.1} parent=1 // pred_region
      %53 = dma.done [#allocation7], 16
    $region25: #{tpu_custom_call.1} parent=1 // pred_fallthru
      _
    %p54 = scmp.eq.s32.totalorder 0, 0
    // Predicated region
    $region26: #{tpu_custom_call.1} parent=1 // pred_check
      %p55 = pneg %p54
    $region27: #{tpu_custom_call.1} parent=1 // pred_check_branch
      %57 = sbr.rel (%p55) target = $region29
    $region28: #{tpu_custom_call.1} parent=1 // pred_region
      %v58 = vld [vmem:[#allocation8] sm:$0x1]
      %v60 = vlaneseq
      %v61 = vshrl.u32 %v60, 7
      %v62 = vsub.s32 0, %v61
      %v63 = vrot.slane %v58, %v62
      %65 = vst [vmem:[#allocation2] sm:$0xff] %v63
      %66 = vst [vmem:[#allocation2 + $0x8] sm:$0xff] %v63
    $region29: #{tpu_custom_call.1} parent=1 // pred_fallthru
      _
    %v67 = vld [vmem:[#allocation3] sm:$0xff]
    %v68 = vld [vmem:[#allocation3 + $0x8] sm:$0xff]
    %v69 = vlaneseq
    %v70 = vand.u32 %v69, 127
    %s71 = smul.u32 0, 128
    %v72 = vstv %s71
    %v73 = vadd.s32 %v72, %v70
    %vm74 = vcmp.lt.s32.totalorder %v73, 32
    %v75 = vsel %vm74, %v67, 0.0
    %v76 = vsel %vm74, %v68, 0.0
    %v77 = vld [vmem:[#allocation2] sm:$0xff]
    %v78 = vld [vmem:[#allocation2 + $0x8] sm:$0xff]
    %v79 = vld [vmem:[#allocation6] sm:$0xff]
    %v80 = vld [vmem:[#allocation6 + $0x8] sm:$0xff]
    %v81 = vld [vmem:[#allocation6 + $0x10] sm:$0xff]
    %v82 = vld [vmem:[#allocation6 + $0x18] sm:$0xff]
    %v83 = vld [vmem:[#allocation6 + $0x20] sm:$0xff]
    %v84 = vld [vmem:[#allocation6 + $0x28] sm:$0xff]
    %v85 = vld [vmem:[#allocation6 + $0x30] sm:$0xff]
    %v86 = vld [vmem:[#allocation6 + $0x38] sm:$0xff]
    %v87 = vld [vmem:[#allocation6 + $0x40] sm:$0xff]
    %v88 = vld [vmem:[#allocation6 + $0x48] sm:$0xff]
    %v89 = vld [vmem:[#allocation6 + $0x50] sm:$0xff]
    %v90 = vld [vmem:[#allocation6 + $0x58] sm:$0xff]
    %v91 = vld [vmem:[#allocation6 + $0x60] sm:$0xff]
    %v92 = vld [vmem:[#allocation6 + $0x68] sm:$0xff]
    %v93 = vld [vmem:[#allocation6 + $0x70] sm:$0xff]
    %v94 = vld [vmem:[#allocation6 + $0x78] sm:$0xff]
    %95 = vmatprep.subr.mxu0 0.0
    %96 = vmatpush1.msra.mxu0 %v79
    %97 = vmatprep.subr.mxu0 0.0
    %98 = vmatpush1.msra.mxu0 %v80
    %99 = vmatprep.subr.mxu0 0.0
    %100 = vmatpush1.msra.mxu0 %v81
    %101 = vmatprep.subr.mxu0 0.0
    %102 = vmatpush1.msra.mxu0 %v82
    %103 = vmatprep.subr.mxu0 0.0
    %104 = vmatpush1.msra.mxu0 %v83
    %105 = vmatprep.subr.mxu0 0.0
    %106 = vmatpush1.msra.mxu0 %v84
    %107 = vmatprep.subr.mxu0 0.0
    %108 = vmatpush1.msra.mxu0 %v85
    %109 = vmatprep.subr.mxu0 0.0
    %110 = vmatpush1.msra.mxu0 %v86
    %111 = vmatprep.subr.mxu0 0.0
    %112 = vmatpush1.msra.mxu0 %v87
    %113 = vmatprep.subr.mxu0 0.0
    %114 = vmatpush1.msra.mxu0 %v88
    %115 = vmatprep.subr.mxu0 0.0
    %116 = vmatpush1.msra.mxu0 %v89
    %117 = vmatprep.subr.mxu0 0.0
    %118 = vmatpush1.msra.mxu0 %v90
    %119 = vmatprep.subr.mxu0 0.0
    %120 = vmatpush1.msra.mxu0 %v91
    %121 = vmatprep.subr.mxu0 0.0
    %122 = vmatpush1.msra.mxu0 %v92
    %123 = vmatprep.subr.mxu0 0.0
    %124 = vmatpush1.msra.mxu0 %v93
    %125 = vmatprep.subr.mxu0 0.0
    %126 = vmatpush1.msra.mxu0 %v94
    %127 = vmatprep.subr.mxu0 0.0
    %128 = vmatpush1.msra.mxu0 0.0
    %129 = vmatprep.subr.mxu0 0.0
    %130 = vmatpush1.msra.mxu0 0.0
    %131 = vmatprep.subr.mxu0 0.0
    %132 = vmatpush1.msra.mxu0 0.0
    %133 = vmatprep.subr.mxu0 0.0
    %134 = vmatpush1.msra.mxu0 0.0
    %135 = vmatprep.subr.mxu0 0.0
    %136 = vmatpush1.msra.mxu0 0.0
    %137 = vmatprep.subr.mxu0 0.0
    %138 = vmatpush1.msra.mxu0 0.0
    %139 = vmatprep.subr.mxu0 0.0
    %140 = vmatpush1.msra.mxu0 0.0
    %141 = vmatprep.subr.mxu0 0.0
    %142 = vmatpush1.msra.mxu0 0.0
    %143 = vmatprep.subr.mxu0 0.0
    %144 = vmatpush1.msra.mxu0 0.0
    %145 = vmatprep.subr.mxu0 0.0
    %146 = vmatpush1.msra.mxu0 0.0
    %147 = vmatprep.subr.mxu0 0.0
    %148 = vmatpush1.msra.mxu0 0.0
    %149 = vmatprep.subr.mxu0 0.0
    %150 = vmatpush1.msra.mxu0 0.0
    %151 = vmatprep.subr.mxu0 0.0
    %152 = vmatpush1.msra.mxu0 0.0
    %153 = vmatprep.subr.mxu0 0.0
    %154 = vmatpush1.msra.mxu0 0.0
    %155 = vmatprep.subr.mxu0 0.0
    %156 = vmatpush1.msra.mxu0 0.0
    %157 = vmatprep.subr.mxu0 0.0
    %158 = vmatpush1.msra.mxu0 0.0
    %159 = vmatprep.mubr.f32.mxu0 0.0
    %160 = vmatmul.mubr.f32.gmra.mrb[0].mxu0 %v75
    %v161 = vpop.f32.mrb[0].mxu0
    %v162 = vadd.f32 0.0, %v161
    %v163 = vpop.f32.mrb[0].mxu0
    %164 = vmatprep.mubr.f32.mxu0 0.0
    %165 = vmatmul.mubr.f32.gmra.mrb[0].mxu0 %v76
    %v166 = vpop.f32.mrb[0].mxu0
    %v167 = vadd.f32 0.0, %v166
    %v168 = vpop.f32.mrb[0].mxu0
    %169 = vdwg.mxu0
    %v170 = vadd.f32 %v77, %v162
    %v171 = vadd.f32 %v78, %v167
    %172 = vst [vmem:[#allocation2] sm:$0xff] %v170
    %173 = vst [vmem:[#allocation2 + $0x8] sm:$0xff] %v171
    // Predicated region
    $region30: #{tpu_custom_call.1} parent=1 // pred_check
      %p174 = pneg %p54
    $region31: #{tpu_custom_call.1} parent=1 // pred_check_branch
      %176 = sbr.rel (%p174) target = $region33
    $region32: #{tpu_custom_call.1} parent=1 // pred_region
      %v177 = vld [vmem:[#allocation2] sm:$0xff]
      %v178 = vld [vmem:[#allocation2 + $0x8] sm:$0xff]
      %vm179 = vcmp.ge.f32.partialorder %v177, 0.0
      %vm180 = vcmp.ge.f32.partialorder %v178, 0.0
      %v181 = vmul.f32 %v177, 0.2
      %v182 = vmul.f32 %v178, 0.2
      %v183 = vsel %vm179, %v177, %v181
      %v184 = vsel %vm180, %v178, %v182
      %185 = vst [vmem:[#allocation9] sm:$0xff] %v183
      %186 = vst [vmem:[#allocation9 + $0x8] sm:$0xff] %v184
    $region33: #{tpu_custom_call.1} parent=1 // pred_fallthru
      _
    // Predicated region
    $region34: #{tpu_custom_call.1} parent=1 // pred_check
      _
    $region35: #{tpu_custom_call.1} parent=1 // pred_check_branch
      %188 = sbr.rel (0) target = $region37
    $region36: #{tpu_custom_call.1} parent=1 // pred_region
      %s190 = ssub.s32 256, 256
      %191 = vsyncadd [#allocation5], %s190
      %s192 = sshll.u32 [#allocation9], 4
      %s193 = int_to_ptr.vmem [resolvable:$true] %s192
      %198 = dma.vmem_to_hbm [thread:$0]  %s193, 256, %s3, [#allocation5], 128, 128, 8
    $region37: #{tpu_custom_call.1} parent=1 // pred_fallthru
      _
    // Predicated region
    $region38: #{tpu_custom_call.1} parent=1 // pred_check
      _
    $region39: #{tpu_custom_call.1} parent=1 // pred_check_branch
      %200 = sbr.rel (0) target = $region41
    $region40: #{tpu_custom_call.1} parent=1 // pred_region
      %201 = dma.done [#allocation5], 256
    $region41: #{tpu_custom_call.1} parent=1 // pred_fallthru
      _
    %202 = vsyncpa [#allocation4], 1
    %203 = vsyncpa [#allocation7], 1
    %204 = vsyncpa [#allocation5], 1

</llo_original>
